<compile_context>
chip_gen: v7x
topology: tpu7x:2x2x1
jax: 0.10.0
libtpu: 0.0.40
codegen_flags: <defaults>
</compile_context>

<pallas_src>
import jax
import jax.numpy as jnp
from jax.experimental import pallas as pl
from jax.experimental.pallas import tpu as pltpu

BERT_DIM = 768
HIDDEN = 64
LANE = 128
SUBLANE = 8


def _round_up(x, m):
    return ((x + m - 1) // m) * m


def _classifier_kernel(x_ref, w1_ref, b1_ref, w2_ref, b2_ref, o_ref):
    # x_ref: (TB, 768), w1_ref: (768, 64), b1_ref: (1, 64)
    # w2_ref: (64, N_pad), b2_ref: (1, N_pad), o_ref: (TB, N_pad)
    h = jnp.dot(x_ref[...], w1_ref[...], preferred_element_type=jnp.float32)
    h = h + b1_ref[...]
    h = jnp.maximum(h, 0.0)                      # ReLU
    out = jnp.dot(h.astype(w2_ref.dtype), w2_ref[...],
                  preferred_element_type=jnp.float32)
    out = out + b2_ref[...]
    # Dropout(p=0.1) in eval mode == identity.
    o_ref[...] = out.astype(o_ref.dtype)


def classifier_forward(x, w1, b1, w2, b2, *, tb=512):
    """x: (B, 768) float32 -> (B, nlabel) float32.

    w1: (768, 64), b1: (1, 64), w2: (64, nlabel), b2: (1, nlabel)
    """
    B, D = x.shape
    assert D == BERT_DIM
    nlabel = w2.shape[1]

    # ---- lane-dense output: pad nlabel up to a multiple of 128 -------------
    n_pad = _round_up(max(nlabel, LANE), LANE)
    if n_pad != nlabel:
        w2 = jnp.pad(w2, ((0, 0), (0, n_pad - nlabel)))
        b2 = jnp.pad(b2, ((0, 0), (0, n_pad - nlabel)))

    # ---- batch tiling with ragged-tail padding -----------------------------
    # Effective tile: never larger than the (sublane-rounded) batch itself.
    tb_eff = min(_round_up(tb, SUBLANE), _round_up(B, SUBLANE))
    b_pad = _round_up(B, tb_eff)
    if b_pad != B:
        x = jnp.pad(x, ((0, b_pad - B), (0, 0)))

    grid = (b_pad // tb_eff,)

    out = pl.pallas_call(
        _classifier_kernel,
        out_shape=jax.ShapeDtypeStruct((b_pad, n_pad), jnp.float32),
        grid_spec=pltpu.PrefetchScalarGridSpec(
            num_scalar_prefetch=0,
            grid=grid,
            in_specs=[
                pl.BlockSpec((tb_eff, BERT_DIM), lambda i: (i, 0)),   # x tile
                pl.BlockSpec((BERT_DIM, HIDDEN), lambda i: (0, 0)),   # W1 (full)
                pl.BlockSpec((1, HIDDEN), lambda i: (0, 0)),          # b1
                pl.BlockSpec((HIDDEN, n_pad), lambda i: (0, 0)),      # W2 (padded)
                pl.BlockSpec((1, n_pad), lambda i: (0, 0)),           # b2 (padded)
            ],
            out_specs=pl.BlockSpec((tb_eff, n_pad), lambda i: (i, 0)),
        ),
        compiler_params=pltpu.CompilerParams(
            dimension_semantics=("parallel",)),
    )(x, w1, b1, w2, b2)

    # Strip batch-row and label-lane padding.
    return out[:B, :nlabel]


def init_params(key, nlabel):
    """Deterministic parameter init (PyTorch-Linear-style uniform ranges)."""
    k1, k2, k3, k4 = jax.random.split(key, 4)
    bound1 = 1.0 / jnp.sqrt(BERT_DIM)
    bound2 = 1.0 / jnp.sqrt(HIDDEN)
    # stored pre-transposed: (in, out)
    w1 = jax.random.uniform(k1, (BERT_DIM, HIDDEN), jnp.float32,
                            -bound1, bound1)
    b1 = jax.random.uniform(k2, (1, HIDDEN), jnp.float32, -bound1, bound1)
    w2 = jax.random.uniform(k3, (HIDDEN, nlabel), jnp.float32,
                            -bound2, bound2)
    b2 = jax.random.uniform(k4, (1, nlabel), jnp.float32, -bound2, bound2)
    return w1, b1, w2, b2


if __name__ == "__main__":
    nlabel = 8
    B = 20   # deliberately NOT a multiple of 8 -> exercises ragged-tail padding

    key = jax.random.PRNGKey(0)
    kx, kp = jax.random.split(key)
    x = jax.random.normal(kx, (B, BERT_DIM), jnp.float32)
    w1, b1, w2, b2 = init_params(kp, nlabel)

    # plain-JAX reference (eval-mode dropout == identity)
    ref = jnp.maximum(x @ w1 + b1, 0.0) @ w2 + b2

    # default (large) tile: single grid step at this toy batch size
    out = jax.block_until_ready(classifier_forward(x, w1, b1, w2, b2))
    assert out.shape == (B, nlabel)
    assert jnp.allclose(out, ref, atol=1e-4, rtol=1e-4)

    # tiny tile: forces a multi-step grid + padded tail block
    out2 = jax.block_until_ready(classifier_forward(x, w1, b1, w2, b2, tb=8))
    assert out2.shape == (B, nlabel)
    assert jnp.allclose(out2, ref, atol=1e-4, rtol=1e-4)

    print("KERNEL_OK")
</pallas_src>

<mosaic_0001>
module attributes {stable_mosaic.version = 11 : i64} {
  func.func @_classifier_kernel(%arg0: i32, %arg1: memref<24x768xf32, #tpu.memory_space<vmem>>, %arg2: memref<768x64xf32, #tpu.memory_space<vmem>>, %arg3: memref<1x64xf32, #tpu.memory_space<vmem>>, %arg4: memref<64x128xf32, #tpu.memory_space<vmem>>, %arg5: memref<1x128xf32, #tpu.memory_space<vmem>>, %arg6: memref<24x128xf32, #tpu.memory_space<vmem>>) attributes {dimension_semantics = [#tpu.dimension_semantics<parallel>], iteration_bounds = array<i64: 1>, scalar_prefetch = 0 : i64, scratch_operands = 0 : i64, tpu.core_type = #tpu.core_type<tc>, window_params = [{transform_indices = @transform_0, window_bounds = array<i64: 24, 768>}, {pipeline_mode = #tpu.pipeline_mode<synchronous>, transform_indices = @transform_1, window_bounds = array<i64: 768, 64>}, {pipeline_mode = #tpu.pipeline_mode<synchronous>, transform_indices = @transform_2, window_bounds = array<i64: 1, 64>}, {pipeline_mode = #tpu.pipeline_mode<synchronous>, transform_indices = @transform_3, window_bounds = array<i64: 64, 128>}, {pipeline_mode = #tpu.pipeline_mode<synchronous>, transform_indices = @transform_4, window_bounds = array<i64: 1, 128>}, {transform_indices = @transform_5, window_bounds = array<i64: 24, 128>}]} {
    %c0 = arith.constant 0 : index
    %c0_0 = arith.constant 0 : index
    %0 = vector.load %arg1[%c0, %c0_0] : memref<24x768xf32, #tpu.memory_space<vmem>>, vector<24x768xf32>
    %c0_1 = arith.constant 0 : index
    %c0_2 = arith.constant 0 : index
    %1 = vector.load %arg2[%c0_1, %c0_2] : memref<768x64xf32, #tpu.memory_space<vmem>>, vector<768x64xf32>
    %cst = arith.constant dense<0.000000e+00> : vector<24x64xf32>
    %2 = tpu.matmul %0, %1, %cst {dimension_numbers = #tpu.dot_dimension_numbers<[1], [0], [0], [1], [0, 0, 1, 1], [], []>} : vector<24x768xf32>, vector<768x64xf32>, vector<24x64xf32> -> vector<24x64xf32>
    %c0_3 = arith.constant 0 : index
    %c0_4 = arith.constant 0 : index
    %3 = vector.load %arg3[%c0_3, %c0_4] : memref<1x64xf32, #tpu.memory_space<vmem>>, vector<1x64xf32>
    %4 = vector.broadcast %3 : vector<1x64xf32> to vector<24x64xf32>
    %5 = arith.addf %2, %4 : vector<24x64xf32>
    %cst_5 = arith.constant 0.000000e+00 : f32
    %6 = vector.broadcast %cst_5 : f32 to vector<24x64xf32>
    %7 = arith.maximumf %5, %6 : vector<24x64xf32>
    %c0_6 = arith.constant 0 : index
    %c0_7 = arith.constant 0 : index
    %8 = vector.load %arg4[%c0_6, %c0_7] : memref<64x128xf32, #tpu.memory_space<vmem>>, vector<64x128xf32>
    %cst_8 = arith.constant dense<0.000000e+00> : vector<24x128xf32>
    %9 = tpu.matmul %7, %8, %cst_8 {dimension_numbers = #tpu.dot_dimension_numbers<[1], [0], [0], [1], [0, 0, 1, 1], [], []>} : vector<24x64xf32>, vector<64x128xf32>, vector<24x128xf32> -> vector<24x128xf32>
    %c0_9 = arith.constant 0 : index
    %c0_10 = arith.constant 0 : index
    %10 = vector.load %arg5[%c0_9, %c0_10] : memref<1x128xf32, #tpu.memory_space<vmem>>, vector<1x128xf32>
    %11 = vector.broadcast %10 : vector<1x128xf32> to vector<24x128xf32>
    %12 = arith.addf %9, %11 : vector<24x128xf32>
    %c0_11 = arith.constant 0 : index
    %c0_12 = arith.constant 0 : index
    %13 = vector.load %arg6[%c0_11, %c0_12] : memref<24x128xf32, #tpu.memory_space<vmem>>, vector<24x128xf32>
    tpu.vector_store %arg6[%c0_11, %c0_12], %12 {strides = array<i32>} : memref<24x128xf32, #tpu.memory_space<vmem>>, vector<24x128xf32>,
    return
  }
  func.func @transform_0(%arg0: i32) -> (i32, i32) {
    %c0_i32 = arith.constant 0 : i32
    %c0_i32_0 = arith.constant 0 : i32
    return %arg0, %c0_i32 : i32, i32
  }
  func.func @transform_1(%arg0: i32) -> (i32, i32) {
    %c0_i32 = arith.constant 0 : i32
    %c0_i32_0 = arith.constant 0 : i32
    %c0_i32_1 = arith.constant 0 : i32
    return %c0_i32, %c0_i32_0 : i32, i32
  }
  func.func @transform_2(%arg0: i32) -> (i32, i32) {
    %c0_i32 = arith.constant 0 : i32
    %c0_i32_0 = arith.constant 0 : i32
    %c0_i32_1 = arith.constant 0 : i32
    return %c0_i32, %c0_i32_0 : i32, i32
  }
  func.func @transform_3(%arg0: i32) -> (i32, i32) {
    %c0_i32 = arith.constant 0 : i32
    %c0_i32_0 = arith.constant 0 : i32
    %c0_i32_1 = arith.constant 0 : i32
    return %c0_i32, %c0_i32_0 : i32, i32
  }
  func.func @transform_4(%arg0: i32) -> (i32, i32) {
    %c0_i32 = arith.constant 0 : i32
    %c0_i32_0 = arith.constant 0 : i32
    %c0_i32_1 = arith.constant 0 : i32
    return %c0_i32, %c0_i32_0 : i32, i32
  }
  func.func @transform_5(%arg0: i32) -> (i32, i32) {
    %c0_i32 = arith.constant 0 : i32
    %c0_i32_0 = arith.constant 0 : i32
    return %arg0, %c0_i32 : i32, i32
  }
}

</mosaic_0001>

<llo_original>
// kernel: tpu_custom_call.1
$region0: #{tpu_custom_call.1}
  #allocation0 [shape = 'u32[]', space=smem, size = 0x4, offset = 0x4, fixed_abs, tag = 'smem constant byte address 0x4 - core index']
  #allocation1 [shape = 'u32[144,128]{1,0:T(1,128)}', space=vmem, size = 0x12000, scoped, tag = 'internal scratch']
  %s0 = inlined_call_operand.vmem [shape: f32[24,768], index: 0, kind: input, shape index: {}]
  %s1 = inlined_call_operand.vmem [shape: f32[768,64], index: 1, kind: input, shape index: {}]
  %s2 = inlined_call_operand.vmem [shape: f32[1,64], index: 2, kind: input, shape index: {}]
  %s3 = inlined_call_operand.vmem [shape: f32[64,128], index: 3, kind: input, shape index: {}]
  %s4 = inlined_call_operand.vmem [shape: f32[1,128], index: 4, kind: input, shape index: {}]
  %s5 = inlined_call_operand.hbm [shape: f32[24,128], index: 5, kind: output, shape index: {}]
  %s6 = sld [smem:[#allocation0]]
  $region30: #{tpu_custom_call.1} parent=0
    _
  %s8 = ssub.s32 1, %s6
  %s9 = scalar_select 0, %s8, %s6
  $region1: #{tpu_custom_call.1} parent=0
    #allocation2 [shape = 'u8[12288]{0}', space=vmem, size = 0x3000, scoped, tag = 'output window, operand 0, single buffered']
    #allocation3 [shape = 's32[1]{0}', space=sflag, size = 0x4, scoped, tag = 'scoped memory for tpu_custom_call.1']
    %10 = vsyncpa [#allocation3], 0
    // Predicated region
    $region2: #{tpu_custom_call.1} parent=1 // pred_check
      _
    $region3: #{tpu_custom_call.1} parent=1 // pred_check_branch
      %12 = sbr.rel (0) target = $region5
    $region4: #{tpu_custom_call.1} parent=1 // pred_region
      _
    $region5: #{tpu_custom_call.1} parent=1 // pred_fallthru
      _
    // Predicated region
    $region6: #{tpu_custom_call.1} parent=1 // pred_check
      _
    $region7: #{tpu_custom_call.1} parent=1 // pred_check_branch
      %14 = sbr.rel (0) target = $region9
    $region8: #{tpu_custom_call.1} parent=1 // pred_region
      _
    $region9: #{tpu_custom_call.1} parent=1 // pred_fallthru
      _
    // Predicated region
    $region10: #{tpu_custom_call.1} parent=1 // pred_check
      _
    $region11: #{tpu_custom_call.1} parent=1 // pred_check_branch
      %16 = sbr.rel (0) target = $region13
    $region12: #{tpu_custom_call.1} parent=1 // pred_region
      _
    $region13: #{tpu_custom_call.1} parent=1 // pred_fallthru
      _
    // Predicated region
    $region14: #{tpu_custom_call.1} parent=1 // pred_check
      _
    $region15: #{tpu_custom_call.1} parent=1 // pred_check_branch
      %18 = sbr.rel (0) target = $region17
    $region16: #{tpu_custom_call.1} parent=1 // pred_region
      _
    $region17: #{tpu_custom_call.1} parent=1 // pred_fallthru
      _
    // Predicated region
    $region18: #{tpu_custom_call.1} parent=1 // pred_check
      _
    $region19: #{tpu_custom_call.1} parent=1 // pred_check_branch
      %20 = sbr.rel (0) target = $region21
    $region20: #{tpu_custom_call.1} parent=1 // pred_region
      _
    $region21: #{tpu_custom_call.1} parent=1 // pred_fallthru
      _
    %v21 = vld [vmem:[%s0] sm:$0xff]
    %v22 = vld [vmem:[%s0 + $0x8] sm:$0xff]
    %v23 = vld [vmem:[%s0 + $0x10] sm:$0xff]
    %v24 = vld [vmem:[%s0 + $0x18] sm:$0xff]
    %v25 = vld [vmem:[%s0 + $0x20] sm:$0xff]
    %v26 = vld [vmem:[%s0 + $0x28] sm:$0xff]
    %v27 = vld [vmem:[%s0 + $0x30] sm:$0xff]
    %v28 = vld [vmem:[%s0 + $0x38] sm:$0xff]
    %v29 = vld [vmem:[%s0 + $0x40] sm:$0xff]
    %v30 = vld [vmem:[%s0 + $0x48] sm:$0xff]
    %v31 = vld [vmem:[%s0 + $0x50] sm:$0xff]
    %v32 = vld [vmem:[%s0 + $0x58] sm:$0xff]
    %v33 = vld [vmem:[%s0 + $0x60] sm:$0xff]
    %v34 = vld [vmem:[%s0 + $0x68] sm:$0xff]
    %v35 = vld [vmem:[%s0 + $0x70] sm:$0xff]
    %v36 = vld [vmem:[%s0 + $0x78] sm:$0xff]
    %v37 = vld [vmem:[%s0 + $0x80] sm:$0xff]
    %v38 = vld [vmem:[%s0 + $0x88] sm:$0xff]
    %v39 = vld [vmem:[%s1] sm:$0xff]
    %v40 = vld [vmem:[%s1 + $0x8] sm:$0xff]
    %v41 = vld [vmem:[%s1 + $0x10] sm:$0xff]
    %v42 = vld [vmem:[%s1 + $0x18] sm:$0xff]
    %v43 = vld [vmem:[%s1 + $0x20] sm:$0xff]
    %v44 = vld [vmem:[%s1 + $0x28] sm:$0xff]
    %v45 = vld [vmem:[%s1 + $0x30] sm:$0xff]
    %v46 = vld [vmem:[%s1 + $0x38] sm:$0xff]
    %v47 = vld [vmem:[%s1 + $0x40] sm:$0xff]
    %v48 = vld [vmem:[%s1 + $0x48] sm:$0xff]
    %v49 = vld [vmem:[%s1 + $0x50] sm:$0xff]
    %v50 = vld [vmem:[%s1 + $0x58] sm:$0xff]
    %v51 = vld [vmem:[%s1 + $0x60] sm:$0xff]
    %v52 = vld [vmem:[%s1 + $0x68] sm:$0xff]
    %v53 = vld [vmem:[%s1 + $0x70] sm:$0xff]
    %v54 = vld [vmem:[%s1 + $0x78] sm:$0xff]
    %v55 = vld [vmem:[%s1 + $0x80] sm:$0xff]
    %v56 = vld [vmem:[%s1 + $0x88] sm:$0xff]
    %v57 = vld [vmem:[%s1 + $0x90] sm:$0xff]
    %v58 = vld [vmem:[%s1 + $0x98] sm:$0xff]
    %v59 = vld [vmem:[%s1 + $0xa0] sm:$0xff]
    %v60 = vld [vmem:[%s1 + $0xa8] sm:$0xff]
    %v61 = vld [vmem:[%s1 + $0xb0] sm:$0xff]
    %v62 = vld [vmem:[%s1 + $0xb8] sm:$0xff]
    %v63 = vld [vmem:[%s1 + $0xc0] sm:$0xff]
    %v64 = vld [vmem:[%s1 + $0xc8] sm:$0xff]
    %v65 = vld [vmem:[%s1 + $0xd0] sm:$0xff]
    %v66 = vld [vmem:[%s1 + $0xd8] sm:$0xff]
    %v67 = vld [vmem:[%s1 + $0xe0] sm:$0xff]
    %v68 = vld [vmem:[%s1 + $0xe8] sm:$0xff]
    %v69 = vld [vmem:[%s1 + $0xf0] sm:$0xff]
    %v70 = vld [vmem:[%s1 + $0xf8] sm:$0xff]
    %v71 = vld [vmem:[%s1 + $0x100] sm:$0xff]
    %v72 = vld [vmem:[%s1 + $0x108] sm:$0xff]
    %v73 = vld [vmem:[%s1 + $0x110] sm:$0xff]
    %v74 = vld [vmem:[%s1 + $0x118] sm:$0xff]
    %v75 = vld [vmem:[%s1 + $0x120] sm:$0xff]
    %v76 = vld [vmem:[%s1 + $0x128] sm:$0xff]
    %v77 = vld [vmem:[%s1 + $0x130] sm:$0xff]
    %v78 = vld [vmem:[%s1 + $0x138] sm:$0xff]
    %v79 = vld [vmem:[%s1 + $0x140] sm:$0xff]
    %v80 = vld [vmem:[%s1 + $0x148] sm:$0xff]
    %v81 = vld [vmem:[%s1 + $0x150] sm:$0xff]
    %v82 = vld [vmem:[%s1 + $0x158] sm:$0xff]
    %v83 = vld [vmem:[%s1 + $0x160] sm:$0xff]
    %v84 = vld [vmem:[%s1 + $0x168] sm:$0xff]
    %v85 = vld [vmem:[%s1 + $0x170] sm:$0xff]
    %v86 = vld [vmem:[%s1 + $0x178] sm:$0xff]
    %v87 = vld [vmem:[%s1 + $0x180] sm:$0xff]
    %v88 = vld [vmem:[%s1 + $0x188] sm:$0xff]
    %v89 = vld [vmem:[%s1 + $0x190] sm:$0xff]
    %v90 = vld [vmem:[%s1 + $0x198] sm:$0xff]
    %v91 = vld [vmem:[%s1 + $0x1a0] sm:$0xff]
    %v92 = vld [vmem:[%s1 + $0x1a8] sm:$0xff]
    %v93 = vld [vmem:[%s1 + $0x1b0] sm:$0xff]
    %v94 = vld [vmem:[%s1 + $0x1b8] sm:$0xff]
    %v95 = vld [vmem:[%s1 + $0x1c0] sm:$0xff]
    %v96 = vld [vmem:[%s1 + $0x1c8] sm:$0xff]
    %v97 = vld [vmem:[%s1 + $0x1d0] sm:$0xff]
    %v98 = vld [vmem:[%s1 + $0x1d8] sm:$0xff]
    %v99 = vld [vmem:[%s1 + $0x1e0] sm:$0xff]
    %v100 = vld [vmem:[%s1 + $0x1e8] sm:$0xff]
    %v101 = vld [vmem:[%s1 + $0x1f0] sm:$0xff]
    %v102 = vld [vmem:[%s1 + $0x1f8] sm:$0xff]
    %v103 = vld [vmem:[%s1 + $0x200] sm:$0xff]
    %v104 = vld [vmem:[%s1 + $0x208] sm:$0xff]
    %v105 = vld [vmem:[%s1 + $0x210] sm:$0xff]
    %v106 = vld [vmem:[%s1 + $0x218] sm:$0xff]
    %v107 = vld [vmem:[%s1 + $0x220] sm:$0xff]
    %v108 = vld [vmem:[%s1 + $0x228] sm:$0xff]
    %v109 = vld [vmem:[%s1 + $0x230] sm:$0xff]
    %v110 = vld [vmem:[%s1 + $0x238] sm:$0xff]
    %v111 = vld [vmem:[%s1 + $0x240] sm:$0xff]
    %v112 = vld [vmem:[%s1 + $0x248] sm:$0xff]
    %v113 = vld [vmem:[%s1 + $0x250] sm:$0xff]
    %v114 = vld [vmem:[%s1 + $0x258] sm:$0xff]
    %v115 = vld [vmem:[%s1 + $0x260] sm:$0xff]
    %v116 = vld [vmem:[%s1 + $0x268] sm:$0xff]
    %v117 = vld [vmem:[%s1 + $0x270] sm:$0xff]
    %v118 = vld [vmem:[%s1 + $0x278] sm:$0xff]
    %v119 = vld [vmem:[%s1 + $0x280] sm:$0xff]
    %v120 = vld [vmem:[%s1 + $0x288] sm:$0xff]
    %v121 = vld [vmem:[%s1 + $0x290] sm:$0xff]
    %v122 = vld [vmem:[%s1 + $0x298] sm:$0xff]
    %v123 = vld [vmem:[%s1 + $0x2a0] sm:$0xff]
    %v124 = vld [vmem:[%s1 + $0x2a8] sm:$0xff]
    %v125 = vld [vmem:[%s1 + $0x2b0] sm:$0xff]
    %v126 = vld [vmem:[%s1 + $0x2b8] sm:$0xff]
    %v127 = vld [vmem:[%s1 + $0x2c0] sm:$0xff]
    %v128 = vld [vmem:[%s1 + $0x2c8] sm:$0xff]
    %v129 = vld [vmem:[%s1 + $0x2d0] sm:$0xff]
    %v130 = vld [vmem:[%s1 + $0x2d8] sm:$0xff]
    %v131 = vld [vmem:[%s1 + $0x2e0] sm:$0xff]
    %v132 = vld [vmem:[%s1 + $0x2e8] sm:$0xff]
    %v133 = vld [vmem:[%s1 + $0x2f0] sm:$0xff]
    %v134 = vld [vmem:[%s1 + $0x2f8] sm:$0xff]
    %v135 = vld [vmem:[%s2] sm:$0x1]
    %v137 = vlaneseq
    %v138 = vshrl.u32 %v137, 7
    %v139 = vsub.s32 0, %v138
    %v140 = vrot.slane %v135, %v139
    %142 = vmatprep.subr.mxu0 0.0
    %143 = vmatpush1.msra.mxu0 %v39
    %144 = vmatprep.subr.mxu0 0.0
    %145 = vmatpush1.msra.mxu0 %v40
    %146 = vmatprep.subr.mxu0 0.0
    %147 = vmatpush1.msra.mxu0 %v41
    %148 = vmatprep.subr.mxu0 0.0
    %149 = vmatpush1.msra.mxu0 %v42
    %150 = vmatprep.subr.mxu0 0.0
    %151 = vmatpush1.msra.mxu0 %v43
    %152 = vmatprep.subr.mxu0 0.0
    %153 = vmatpush1.msra.mxu0 %v44
    %154 = vmatprep.subr.mxu0 0.0
    %155 = vmatpush1.msra.mxu0 %v45
    %156 = vmatprep.subr.mxu0 0.0
    %157 = vmatpush1.msra.mxu0 %v46
    %158 = vmatprep.subr.mxu0 0.0
    %159 = vmatpush1.msra.mxu0 %v47
    %160 = vmatprep.subr.mxu0 0.0
    %161 = vmatpush1.msra.mxu0 %v48
    %162 = vmatprep.subr.mxu0 0.0
    %163 = vmatpush1.msra.mxu0 %v49
    %164 = vmatprep.subr.mxu0 0.0
    %165 = vmatpush1.msra.mxu0 %v50
    %166 = vmatprep.subr.mxu0 0.0
    %167 = vmatpush1.msra.mxu0 %v51
    %168 = vmatprep.subr.mxu0 0.0
    %169 = vmatpush1.msra.mxu0 %v52
    %170 = vmatprep.subr.mxu0 0.0
    %171 = vmatpush1.msra.mxu0 %v53
    %172 = vmatprep.subr.mxu0 0.0
    %173 = vmatpush1.msra.mxu0 %v54
    %174 = vmatprep.subr.mxu0 0.0
    %175 = vmatpush1.msra.mxu0 %v55
    %176 = vmatprep.subr.mxu0 0.0
    %177 = vmatpush1.msra.mxu0 %v56
    %178 = vmatprep.subr.mxu0 0.0
    %179 = vmatpush1.msra.mxu0 %v57
    %180 = vmatprep.subr.mxu0 0.0
    %181 = vmatpush1.msra.mxu0 %v58
    %182 = vmatprep.subr.mxu0 0.0
    %183 = vmatpush1.msra.mxu0 %v59
    %184 = vmatprep.subr.mxu0 0.0
    %185 = vmatpush1.msra.mxu0 %v60
    %186 = vmatprep.subr.mxu0 0.0
    %187 = vmatpush1.msra.mxu0 %v61
    %188 = vmatprep.subr.mxu0 0.0
    %189 = vmatpush1.msra.mxu0 %v62
    %190 = vmatprep.subr.mxu0 0.0
    %191 = vmatpush1.msra.mxu0 %v63
    %192 = vmatprep.subr.mxu0 0.0
    %193 = vmatpush1.msra.mxu0 %v64
    %194 = vmatprep.subr.mxu0 0.0
    %195 = vmatpush1.msra.mxu0 %v65
    %196 = vmatprep.subr.mxu0 0.0
    %197 = vmatpush1.msra.mxu0 %v66
    %198 = vmatprep.subr.mxu0 0.0
    %199 = vmatpush1.msra.mxu0 %v67
    %200 = vmatprep.subr.mxu0 0.0
    %201 = vmatpush1.msra.mxu0 %v68
    %202 = vmatprep.subr.mxu0 0.0
    %203 = vmatpush1.msra.mxu0 %v69
    %204 = vmatprep.subr.mxu0 0.0
    %205 = vmatpush1.msra.mxu0 %v70
    %206 = vmatprep.mubr.f32.mxu0 %v22
    %207 = vmatmul.mubr.f32.gmra.mrb[0].mxu0 %v21
    %v208 = vpop.f32.mrb[0].mxu0
    %v209 = vadd.f32 %v140, %v208
    %v210 = vpop.f32.mrb[0].mxu0
    %211 = vmatprep.mubr.f32.mxu0 %v28
    %212 = vmatmul.mubr.f32.gmra.mrb[0].mxu0 %v27
    %v213 = vpop.f32.mrb[0].mxu0
    %v214 = vadd.f32 %v140, %v213
    %v215 = vpop.f32.mrb[0].mxu0
    %216 = vmatprep.mubr.f32.mxu0 %v34
    %217 = vmatmul.mubr.f32.gmra.mrb[0].mxu0 %v33
    %v218 = vpop.f32.mrb[0].mxu0
    %v219 = vadd.f32 %v140, %v218
    %v220 = vpop.f32.mrb[0].mxu0
    %221 = vdwg.mxu0
    %222 = vmatprep.subr.mxu0 0.0
    %223 = vmatpush1.msra.mxu0 %v71
    %224 = vmatprep.subr.mxu0 0.0
    %225 = vmatpush1.msra.mxu0 %v72
    %226 = vmatprep.subr.mxu0 0.0
    %227 = vmatpush1.msra.mxu0 %v73
    %228 = vmatprep.subr.mxu0 0.0
    %229 = vmatpush1.msra.mxu0 %v74
    %230 = vmatprep.subr.mxu0 0.0
    %231 = vmatpush1.msra.mxu0 %v75
    %232 = vmatprep.subr.mxu0 0.0
    %233 = vmatpush1.msra.mxu0 %v76
    %234 = vmatprep.subr.mxu0 0.0
    %235 = vmatpush1.msra.mxu0 %v77
    %236 = vmatprep.subr.mxu0 0.0
    %237 = vmatpush1.msra.mxu0 %v78
    %238 = vmatprep.subr.mxu0 0.0
    %239 = vmatpush1.msra.mxu0 %v79
    %240 = vmatprep.subr.mxu0 0.0
    %241 = vmatpush1.msra.mxu0 %v80
    %242 = vmatprep.subr.mxu0 0.0
    %243 = vmatpush1.msra.mxu0 %v81
    %244 = vmatprep.subr.mxu0 0.0
    %245 = vmatpush1.msra.mxu0 %v82
    %246 = vmatprep.subr.mxu0 0.0
    %247 = vmatpush1.msra.mxu0 %v83
    %248 = vmatprep.subr.mxu0 0.0
    %249 = vmatpush1.msra.mxu0 %v84
    %250 = vmatprep.subr.mxu0 0.0
    %251 = vmatpush1.msra.mxu0 %v85
    %252 = vmatprep.subr.mxu0 0.0
    %253 = vmatpush1.msra.mxu0 %v86
    %254 = vmatprep.subr.mxu0 0.0
    %255 = vmatpush1.msra.mxu0 %v87
    %256 = vmatprep.subr.mxu0 0.0
    %257 = vmatpush1.msra.mxu0 %v88
    %258 = vmatprep.subr.mxu0 0.0
    %259 = vmatpush1.msra.mxu0 %v89
    %260 = vmatprep.subr.mxu0 0.0
    %261 = vmatpush1.msra.mxu0 %v90
    %262 = vmatprep.subr.mxu0 0.0
    %263 = vmatpush1.msra.mxu0 %v91
    %264 = vmatprep.subr.mxu0 0.0
    %265 = vmatpush1.msra.mxu0 %v92
    %266 = vmatprep.subr.mxu0 0.0
    %267 = vmatpush1.msra.mxu0 %v93
    %268 = vmatprep.subr.mxu0 0.0
    %269 = vmatpush1.msra.mxu0 %v94
    %270 = vmatprep.subr.mxu0 0.0
    %271 = vmatpush1.msra.mxu0 %v95
    %272 = vmatprep.subr.mxu0 0.0
    %273 = vmatpush1.msra.mxu0 %v96
    %274 = vmatprep.subr.mxu0 0.0
    %275 = vmatpush1.msra.mxu0 %v97
    %276 = vmatprep.subr.mxu0 0.0
    %277 = vmatpush1.msra.mxu0 %v98
    %278 = vmatprep.subr.mxu0 0.0
    %279 = vmatpush1.msra.mxu0 %v99
    %280 = vmatprep.subr.mxu0 0.0
    %281 = vmatpush1.msra.mxu0 %v100
    %282 = vmatprep.subr.mxu0 0.0
    %283 = vmatpush1.msra.mxu0 %v101
    %284 = vmatprep.subr.mxu0 0.0
    %285 = vmatpush1.msra.mxu0 %v102
    %286 = vmatprep.mubr.f32.mxu0 %v24
    %287 = vmatmul.mubr.f32.gmra.mrb[0].mxu0 %v23
    %v288 = vpop.f32.mrb[0].mxu0
    %v289 = vadd.f32 %v209, %v288
    %v290 = vpop.f32.mrb[0].mxu0
    %291 = vmatprep.mubr.f32.mxu0 %v30
    %292 = vmatmul.mubr.f32.gmra.mrb[0].mxu0 %v29
    %v293 = vpop.f32.mrb[0].mxu0
    %v294 = vadd.f32 %v214, %v293
    %v295 = vpop.f32.mrb[0].mxu0
    %296 = vmatprep.mubr.f32.mxu0 %v36
    %297 = vmatmul.mubr.f32.gmra.mrb[0].mxu0 %v35
    %v298 = vpop.f32.mrb[0].mxu0
    %v299 = vadd.f32 %v219, %v298
    %v300 = vpop.f32.mrb[0].mxu0
    %301 = vdwg.mxu0
    %302 = vmatprep.subr.mxu0 0.0
    %303 = vmatpush1.msra.mxu0 %v103
    %304 = vmatprep.subr.mxu0 0.0
    %305 = vmatpush1.msra.mxu0 %v104
    %306 = vmatprep.subr.mxu0 0.0
    %307 = vmatpush1.msra.mxu0 %v105
    %308 = vmatprep.subr.mxu0 0.0
    %309 = vmatpush1.msra.mxu0 %v106
    %310 = vmatprep.subr.mxu0 0.0
    %311 = vmatpush1.msra.mxu0 %v107
    %312 = vmatprep.subr.mxu0 0.0
    %313 = vmatpush1.msra.mxu0 %v108
    %314 = vmatprep.subr.mxu0 0.0
    %315 = vmatpush1.msra.mxu0 %v109
    %316 = vmatprep.subr.mxu0 0.0
    %317 = vmatpush1.msra.mxu0 %v110
    %318 = vmatprep.subr.mxu0 0.0
    %319 = vmatpush1.msra.mxu0 %v111
    %320 = vmatprep.subr.mxu0 0.0
    %321 = vmatpush1.msra.mxu0 %v112
    %322 = vmatprep.subr.mxu0 0.0
    %323 = vmatpush1.msra.mxu0 %v113
    %324 = vmatprep.subr.mxu0 0.0
    %325 = vmatpush1.msra.mxu0 %v114
    %326 = vmatprep.subr.mxu0 0.0
    %327 = vmatpush1.msra.mxu0 %v115
    %328 = vmatprep.subr.mxu0 0.0
    %329 = vmatpush1.msra.mxu0 %v116
    %330 = vmatprep.subr.mxu0 0.0
    %331 = vmatpush1.msra.mxu0 %v117
    %332 = vmatprep.subr.mxu0 0.0
    %333 = vmatpush1.msra.mxu0 %v118
    %334 = vmatprep.subr.mxu0 0.0
    %335 = vmatpush1.msra.mxu0 %v119
    %336 = vmatprep.subr.mxu0 0.0
    %337 = vmatpush1.msra.mxu0 %v120
    %338 = vmatprep.subr.mxu0 0.0
    %339 = vmatpush1.msra.mxu0 %v121
    %340 = vmatprep.subr.mxu0 0.0
    %341 = vmatpush1.msra.mxu0 %v122
    %342 = vmatprep.subr.mxu0 0.0
    %343 = vmatpush1.msra.mxu0 %v123
    %344 = vmatprep.subr.mxu0 0.0
    %345 = vmatpush1.msra.mxu0 %v124
    %346 = vmatprep.subr.mxu0 0.0
    %347 = vmatpush1.msra.mxu0 %v125
    %348 = vmatprep.subr.mxu0 0.0
    %349 = vmatpush1.msra.mxu0 %v126
    %350 = vmatprep.subr.mxu0 0.0
    %351 = vmatpush1.msra.mxu0 %v127
    %352 = vmatprep.subr.mxu0 0.0
    %353 = vmatpush1.msra.mxu0 %v128
    %354 = vmatprep.subr.mxu0 0.0
    %355 = vmatpush1.msra.mxu0 %v129
    %356 = vmatprep.subr.mxu0 0.0
    %357 = vmatpush1.msra.mxu0 %v130
    %358 = vmatprep.subr.mxu0 0.0
    %359 = vmatpush1.msra.mxu0 %v131
    %360 = vmatprep.subr.mxu0 0.0
    %361 = vmatpush1.msra.mxu0 %v132
    %362 = vmatprep.subr.mxu0 0.0
    %363 = vmatpush1.msra.mxu0 %v133
    %364 = vmatprep.subr.mxu0 0.0
    %365 = vmatpush1.msra.mxu0 %v134
    %366 = vmatprep.mubr.f32.mxu0 %v26
    %367 = vmatmul.mubr.f32.gmra.mrb[0].mxu0 %v25
    %v368 = vpop.f32.mrb[0].mxu0
    %v369 = vadd.f32 %v289, %v368
    %v370 = vpop.f32.mrb[0].mxu0
    %371 = vmatprep.mubr.f32.mxu0 %v32
    %372 = vmatmul.mubr.f32.gmra.mrb[0].mxu0 %v31
    %v373 = vpop.f32.mrb[0].mxu0
    %v374 = vadd.f32 %v294, %v373
    %v375 = vpop.f32.mrb[0].mxu0
    %376 = vmatprep.mubr.f32.mxu0 %v38
    %377 = vmatmul.mubr.f32.gmra.mrb[0].mxu0 %v37
    %v378 = vpop.f32.mrb[0].mxu0
    %v379 = vadd.f32 %v299, %v378
    %v380 = vpop.f32.mrb[0].mxu0
    %381 = vdwg.mxu0
    %v382 = vmax.f32 %v369, 0.0
    %v383 = vmax.f32 %v374, 0.0
    %v384 = vmax.f32 %v379, 0.0
    %v385 = vld [vmem:[%s3] sm:$0xff]
    %v386 = vld [vmem:[%s3 + $0x8] sm:$0xff]
    %v387 = vld [vmem:[%s3 + $0x10] sm:$0xff]
    %v388 = vld [vmem:[%s3 + $0x18] sm:$0xff]
    %v389 = vld [vmem:[%s3 + $0x20] sm:$0xff]
    %v390 = vld [vmem:[%s3 + $0x28] sm:$0xff]
    %v391 = vld [vmem:[%s3 + $0x30] sm:$0xff]
    %v392 = vld [vmem:[%s3 + $0x38] sm:$0xff]
    %v393 = vld [vmem:[%s4] sm:$0x1]
    %v395 = vlaneseq
    %v396 = vshrl.u32 %v395, 7
    %v397 = vsub.s32 0, %v396
    %v398 = vrot.slane %v393, %v397
    %vm400 = vcmask 523264
    %v402 = vsel %vm400, %v382, 0
    %v405 = vsel %vm400, %v383, 0
    %v408 = vsel %vm400, %v384, 0
    %410 = vmatprep.subr.mxu0 0.0
    %411 = vmatpush1.msra.mxu0 %v385
    %412 = vmatprep.subr.mxu0 0.0
    %413 = vmatpush1.msra.mxu0 %v386
    %414 = vmatprep.subr.mxu0 0.0
    %415 = vmatpush1.msra.mxu0 %v387
    %416 = vmatprep.subr.mxu0 0.0
    %417 = vmatpush1.msra.mxu0 %v388
    %418 = vmatprep.subr.mxu0 0.0
    %419 = vmatpush1.msra.mxu0 %v389
    %420 = vmatprep.subr.mxu0 0.0
    %421 = vmatpush1.msra.mxu0 %v390
    %422 = vmatprep.subr.mxu0 0.0
    %423 = vmatpush1.msra.mxu0 %v391
    %424 = vmatprep.subr.mxu0 0.0
    %425 = vmatpush1.msra.mxu0 %v392
    %426 = vmatprep.subr.mxu0 0.0
    %427 = vmatpush1.msra.mxu0 0.0
    %428 = vmatprep.subr.mxu0 0.0
    %429 = vmatpush1.msra.mxu0 0.0
    %430 = vmatprep.subr.mxu0 0.0
    %431 = vmatpush1.msra.mxu0 0.0
    %432 = vmatprep.subr.mxu0 0.0
    %433 = vmatpush1.msra.mxu0 0.0
    %434 = vmatprep.subr.mxu0 0.0
    %435 = vmatpush1.msra.mxu0 0.0
    %436 = vmatprep.subr.mxu0 0.0
    %437 = vmatpush1.msra.mxu0 0.0
    %438 = vmatprep.subr.mxu0 0.0
    %439 = vmatpush1.msra.mxu0 0.0
    %440 = vmatprep.subr.mxu0 0.0
    %441 = vmatpush1.msra.mxu0 0.0
    %442 = vmatprep.subr.mxu0 0.0
    %443 = vmatpush1.msra.mxu0 0.0
    %444 = vmatprep.subr.mxu0 0.0
    %445 = vmatpush1.msra.mxu0 0.0
    %446 = vmatprep.subr.mxu0 0.0
    %447 = vmatpush1.msra.mxu0 0.0
    %448 = vmatprep.subr.mxu0 0.0
    %449 = vmatpush1.msra.mxu0 0.0
    %450 = vmatprep.subr.mxu0 0.0
    %451 = vmatpush1.msra.mxu0 0.0
    %452 = vmatprep.subr.mxu0 0.0
    %453 = vmatpush1.msra.mxu0 0.0
    %454 = vmatprep.subr.mxu0 0.0
    %455 = vmatpush1.msra.mxu0 0.0
    %456 = vmatprep.subr.mxu0 0.0
    %457 = vmatpush1.msra.mxu0 0.0
    %458 = vmatprep.subr.mxu0 0.0
    %459 = vmatpush1.msra.mxu0 0.0
    %460 = vmatprep.subr.mxu0 0.0
    %461 = vmatpush1.msra.mxu0 0.0
    %462 = vmatprep.subr.mxu0 0.0
    %463 = vmatpush1.msra.mxu0 0.0
    %464 = vmatprep.subr.mxu0 0.0
    %465 = vmatpush1.msra.mxu0 0.0
    %466 = vmatprep.subr.mxu0 0.0
    %467 = vmatpush1.msra.mxu0 0.0
    %468 = vmatprep.subr.mxu0 0.0
    %469 = vmatpush1.msra.mxu0 0.0
    %470 = vmatprep.subr.mxu0 0.0
    %471 = vmatpush1.msra.mxu0 0.0
    %472 = vmatprep.subr.mxu0 0.0
    %473 = vmatpush1.msra.mxu0 0.0
    %474 = vmatprep.mubr.f32.mxu0 0.0
    %475 = vmatmul.mubr.f32.gmra.mrb[0].mxu0 %v402
    %v476 = vpop.f32.mrb[0].mxu0
    %v477 = vadd.f32 %v398, %v476
    %v478 = vpop.f32.mrb[0].mxu0
    %479 = vmatprep.mubr.f32.mxu0 0.0
    %480 = vmatmul.mubr.f32.gmra.mrb[0].mxu0 %v405
    %v481 = vpop.f32.mrb[0].mxu0
    %v482 = vadd.f32 %v398, %v481
    %v483 = vpop.f32.mrb[0].mxu0
    %484 = vmatprep.mubr.f32.mxu0 0.0
    %485 = vmatmul.mubr.f32.gmra.mrb[0].mxu0 %v408
    %v486 = vpop.f32.mrb[0].mxu0
    %v487 = vadd.f32 %v398, %v486
    %v488 = vpop.f32.mrb[0].mxu0
    %489 = vdwg.mxu0
    %490 = vst [vmem:[#allocation2] sm:$0xff] %v477
    %491 = vst [vmem:[#allocation2 + $0x8] sm:$0xff] %v482
    %492 = vst [vmem:[#allocation2 + $0x10] sm:$0xff] %v487
    // Predicated region
    $region22: #{tpu_custom_call.1} parent=1 // pred_check
      _
    $region23: #{tpu_custom_call.1} parent=1 // pred_check_branch
      %494 = sbr.rel (0) target = $region25
    $region24: #{tpu_custom_call.1} parent=1 // pred_region
      %s496 = ssub.s32 384, 384
      %497 = vsyncadd [#allocation3], %s496
      %s498 = sshll.u32 [#allocation2], 4
      %s499 = int_to_ptr.vmem [resolvable:$true] %s498
      %504 = dma.vmem_to_hbm [thread:$0]  %s499, 384, %s5, [#allocation3], 128, 128, 8
    $region25: #{tpu_custom_call.1} parent=1 // pred_fallthru
      _
    // Predicated region
    $region26: #{tpu_custom_call.1} parent=1 // pred_check
      _
    $region27: #{tpu_custom_call.1} parent=1 // pred_check_branch
      %506 = sbr.rel (0) target = $region29
    $region28: #{tpu_custom_call.1} parent=1 // pred_region
      %507 = dma.done [#allocation3], 384
    $region29: #{tpu_custom_call.1} parent=1 // pred_fallthru
      _
    %508 = vsyncpa [#allocation3], 1

</llo_original>
